<compile_context>
chip_gen: v5e
topology: v5e:2x2
jax: 0.10.0
libtpu: 0.0.40
codegen_flags: <defaults>
</compile_context>

<pallas_src>
import functools

import jax
import jax.numpy as jnp
from jax.experimental import pallas as pl
from jax.experimental.pallas import tpu as pltpu


def _diffusion_kernel(adj_ref, x_ref, o_ref, *, step):
    # adj_ref: (N, N) full block (same block every grid step)
    # x_ref / o_ref: (N, TF) lane-dense feature tile
    x = x_ref[...]
    prod = jnp.dot(adj_ref[...], x, preferred_element_type=jnp.float32)  # MXU
    out = (1.0 - step) * x.astype(jnp.float32) + step * prod            # f32 FMA epilogue
    o_ref[...] = out.astype(o_ref.dtype)


def _choose_feature_tile(n, f, itemsize=4, max_tile=2048, budget_bytes=40 << 20):
    """Largest multiple of 128 (power-of-two stride, <= max_tile) dividing f
    whose double-buffered footprint (adj + x tile + out tile) fits a VMEM
    budget sized for v7x's 64 MiB VMEM (v5e/v6e have 128 MiB, so it also fits
    there with room to spare)."""
    if f % 128 != 0:
        return f                       # full-extent block is always legal
    best = None
    tf = 128
    while tf <= min(f, max_tile):
        if f % tf == 0:
            footprint = itemsize * (2 * n * n + 4 * n * tf)
            if footprint <= budget_bytes:
                best = tf
        tf *= 2
    return best if best is not None else f


def diffusion_layer(x, adj, step):
    """x: (N, C, H, W) float32, adj: (N, N) float32 -> same shape/dtype as x."""
    n = x.shape[0]
    xf = x.reshape(n, -1)              # flatten(1) — layout glue in plain JAX
    f = xf.shape[1]

    tf = _choose_feature_tile(n, f)
    assert f % tf == 0
    grid = (f // tf,)

    itemsize = jnp.dtype(xf.dtype).itemsize
    # adj (double-buffered by the pipeline) + double-buffered x / out tiles + slack.
    footprint = itemsize * (2 * n * n + 4 * n * tf) + (4 << 20)
    vmem_limit = min(max(footprint, 32 << 20), 48 << 20)   # stays safe on v7x (64 MiB)

    cost = pl.CostEstimate(
        flops=2 * n * n * f,
        transcendentals=0,
        bytes_accessed=itemsize * (2 * n * f + n * n),
    )

    # NOTE: step is a construction-time Python float (matches the nn.Module
    # __init__ contract); if it ever needs to be traced, pass it as an SMEM
    # scalar input instead of baking it into the kernel.
    out_flat = pl.pallas_call(
        functools.partial(_diffusion_kernel, step=float(step)),
        out_shape=jax.ShapeDtypeStruct((n, f), xf.dtype),
        grid_spec=pltpu.PrefetchScalarGridSpec(
            num_scalar_prefetch=0,
            grid=grid,
            in_specs=[
                pl.BlockSpec((n, n), lambda j: (0, 0)),    # adj: constant block
                pl.BlockSpec((n, tf), lambda j: (0, j)),   # x feature tile
            ],
            out_specs=pl.BlockSpec((n, tf), lambda j: (0, j)),
        ),
        compiler_params=pltpu.CompilerParams(
            # F tiles are independent -> shard across both TensorCores on v7x;
            # harmless no-op on v5e/v6e (single TC).
            dimension_semantics=("parallel",),
            vmem_limit_bytes=vmem_limit,
        ),
        cost_estimate=cost,
    )(adj, xf)

    return out_flat.reshape(x.shape)   # view_as(x)


if __name__ == "__main__":
    key = jax.random.PRNGKey(0)
    k1, k2 = jax.random.split(key)

    # Small shapes consistent with the forward: x is (N, C, H, W), adj is (N, N).
    # F = C*H*W = 4096 -> TF = 2048, grid = (2,) exercises the tiled pipeline.
    N, C, H, W = 8, 4, 32, 32
    step = 0.1

    x = jax.random.normal(k1, (N, C, H, W), dtype=jnp.float32)
    adj_raw = jax.random.uniform(k2, (N, N), dtype=jnp.float32)
    adj = 0.5 * (adj_raw + adj_raw.T)   # deterministic symmetric adjacency

    out = diffusion_layer(x, adj, step)
    out = jax.block_until_ready(out)

    # Pure-JAX reference check (original formulation with the explicit identity).
    eye = jnp.eye(N, dtype=jnp.float32)
    ref = x - step * ((eye - adj) @ x.reshape(N, -1)).reshape(x.shape)
    assert jnp.allclose(out, ref, atol=1e-5, rtol=1e-5), "mismatch vs reference"

    print("KERNEL_OK")
</pallas_src>

<mosaic_0001>
module attributes {stable_mosaic.version = 11 : i64} {
  func.func @_diffusion_kernel(%arg0: i32, %arg1: memref<8x8xf32, #tpu.memory_space<vmem>>, %arg2: memref<8x2048xf32, #tpu.memory_space<vmem>>, %arg3: memref<8x2048xf32, #tpu.memory_space<vmem>>) attributes {dimension_semantics = [#tpu.dimension_semantics<parallel>], iteration_bounds = array<i64: 2>, scalar_prefetch = 0 : i64, scratch_operands = 0 : i64, tpu.core_type = #tpu.core_type<tc>, window_params = [{pipeline_mode = #tpu.pipeline_mode<synchronous>, transform_indices = @transform_0, window_bounds = array<i64: 8, 8>}, {transform_indices = @transform_1, window_bounds = array<i64: 8, 2048>}, {transform_indices = @transform_2, window_bounds = array<i64: 8, 2048>}]} {
    %c0 = arith.constant 0 : index
    %c0_0 = arith.constant 0 : index
    %0 = vector.load %arg2[%c0, %c0_0] : memref<8x2048xf32, #tpu.memory_space<vmem>>, vector<8x2048xf32>
    %c0_1 = arith.constant 0 : index
    %c0_2 = arith.constant 0 : index
    %1 = vector.load %arg1[%c0_1, %c0_2] : memref<8x8xf32, #tpu.memory_space<vmem>>, vector<8x8xf32>
    %cst = arith.constant dense<0.000000e+00> : vector<8x2048xf32>
    %2 = tpu.matmul %1, %0, %cst {dimension_numbers = #tpu.dot_dimension_numbers<[1], [0], [0], [1], [0, 0, 1, 1], [], []>} : vector<8x8xf32>, vector<8x2048xf32>, vector<8x2048xf32> -> vector<8x2048xf32>
    %cst_3 = arith.constant 0.899999976 : f32
    %3 = vector.broadcast %cst_3 : f32 to vector<8x2048xf32>
    %4 = arith.mulf %3, %0 : vector<8x2048xf32>
    %cst_4 = arith.constant 1.000000e-01 : f32
    %5 = vector.broadcast %cst_4 : f32 to vector<8x2048xf32>
    %6 = arith.mulf %5, %2 : vector<8x2048xf32>
    %7 = arith.addf %4, %6 : vector<8x2048xf32>
    %c0_5 = arith.constant 0 : index
    %c0_6 = arith.constant 0 : index
    %8 = vector.load %arg3[%c0_5, %c0_6] : memref<8x2048xf32, #tpu.memory_space<vmem>>, vector<8x2048xf32>
    tpu.vector_store %arg3[%c0_5, %c0_6], %7 {strides = array<i32>} : memref<8x2048xf32, #tpu.memory_space<vmem>>, vector<8x2048xf32>,
    return
  }
  func.func @transform_0(%arg0: i32) -> (i32, i32) {
    %c0_i32 = arith.constant 0 : i32
    %c0_i32_0 = arith.constant 0 : i32
    %c0_i32_1 = arith.constant 0 : i32
    return %c0_i32, %c0_i32_0 : i32, i32
  }
  func.func @transform_1(%arg0: i32) -> (i32, i32) {
    %c0_i32 = arith.constant 0 : i32
    %c0_i32_0 = arith.constant 0 : i32
    return %c0_i32, %arg0 : i32, i32
  }
  func.func @transform_2(%arg0: i32) -> (i32, i32) {
    %c0_i32 = arith.constant 0 : i32
    %c0_i32_0 = arith.constant 0 : i32
    return %c0_i32, %arg0 : i32, i32
  }
}

</mosaic_0001>

<llo_original>
// kernel: tpu_custom_call.1
$region0: #{tpu_custom_call.1}
  #allocation0 [shape = 'u32[]', space=smem, size = 0x4, offset = 0x4, fixed_abs, tag = 'smem constant byte address 0x4 - core index']
  #allocation1 [shape = 'u32[72,128]{1,0:T(1,128)}', space=vmem, size = 0x9000, scoped, tag = 'internal scratch']
  %s0 = inlined_call_operand.hbm [shape: f32[8,8], index: 0, kind: input, shape index: {}]
  %s1 = inlined_call_operand.hbm [shape: f32[8,4096], index: 1, kind: input, shape index: {}]
  %s2 = inlined_call_operand.hbm [shape: f32[8,4096], index: 2, kind: output, shape index: {}]
  %s3 = sld [smem:[#allocation0]]
  $region49: #{tpu_custom_call.1} parent=0
    _
  %s5 = ssub.s32 1, %s3
  %s6 = scalar_select 0, %s5, %s3
  $region1: #{tpu_custom_call.1} parent=0
    #allocation2 [shape = 'u8[4096]{0}', space=vmem, size = 0x1000, scoped, tag = 'input window, operand 0, single buffered']
    #allocation3 [shape = 's32[2]{0}', space=sflag, size = 0x8, scoped, tag = 'scoped memory for tpu_custom_call.1']
    #allocation4 [shape = 's32[2]{0}', space=sflag, size = 0x8, scoped, tag = 'scoped memory for tpu_custom_call.1']
    #allocation5 [shape = 'u8[131072]{0}', space=vmem, size = 0x20000, scoped, tag = 'input window, operand 1']
    #allocation6 [shape = 's32[2]{0}', space=sflag, size = 0x8, scoped, tag = 'scoped memory for tpu_custom_call.1']
    #allocation7 [shape = 'u8[131072]{0}', space=vmem, size = 0x20000, scoped, tag = 'output window, operand 0']
    %7 = vsyncpa [#allocation3], 0
    %8 = vsyncpa [#allocation6], 0
    %s9 = scalar_lea.sflag [#allocation6], 1
    %10 = vsyncpa %s9, 0
    %11 = vsyncpa [#allocation4], 0
    %s12 = scalar_lea.sflag [#allocation4], 1
    %13 = vsyncpa %s12, 0
    loop: start=0, step=1, limit=4
    $region2: #{tpu_custom_call.1} parent=1 // loop_pre_header
      _
    $region3: #{tpu_custom_call.1} parent=1 // loop_header
      %s15 = sphi 0, %s19
      %p16 = scmp.ge.s32.totalorder %s15, 4
      %s23 = sphi 0, %s23
      %s25 = sphi 0, %s23
      %s26 = sphi 0, %s25
      %s40 = sphi 0, %s26
      %s46 = sphi 0, %s48
      %s49 = sphi 0, %s46
      %s50 = sphi 0, %s49
      %s66 = sphi 0, %s50
      %s72 = sphi 0, %s74
      %s75 = sphi 0, %s72
      %s76 = sphi 0, %s75
      %s92 = sphi 0, %s76
    $region4: #{tpu_custom_call.1} parent=1 // loop_header_branch
      %18 = sbr.rel (%p16) target = $region8
    $region5: #{tpu_custom_call.1} parent=1 // loop_body
      %s20 = ssub.s32 %s15, 1
      %s21 = ssub.s32 %s15, 2
      %s22 = sadd.s32 %s15, 1
      %s24 = sadd.s32 %s23, 1
      %p27 = scmp.eq.s32.totalorder %s15, 1
      %p28 = scmp.ne.s32.totalorder %s23, %s25
      %p29 = scmp.eq.s32.totalorder %s15, 0
      %p30 = por %p28, %p29
      %p31 = scmp.ne.s32.totalorder %s23, %s25
      %p32 = scmp.eq.s32.totalorder %s20, 1
      %p33 = por %p31, %p32
      %p34 = scmp.ne.s32.totalorder %s25, %s26
      %p35 = scmp.eq.s32.totalorder %s20, 0
      %p36 = por %p34, %p35
      %p37 = scmp.ne.s32.totalorder %s25, %s26
      %p38 = scmp.eq.s32.totalorder %s21, 1
      %p39 = por %p37, %p38
      %p41 = scmp.ne.s32.totalorder %s26, %s40
      %p42 = scmp.eq.s32.totalorder %s21, 0
      %p43 = por %p41, %p42
      %s44 = ssub.s32 %s15, %s22
      %p45 = scmp.eq.s32.totalorder %s44, 0
      %s47 = sadd.s32 %s46, 1
      %s48 = scalar_select %p45, %s46, %s47
      %p51 = pneg %p45
      %p52 = scmp.eq.s32.totalorder %s15, 1
      %p53 = por %p51, %p52
      %p54 = scmp.ne.s32.totalorder %s46, %s49
      %p55 = scmp.eq.s32.totalorder %s15, 0
      %p56 = por %p54, %p55
      %p57 = scmp.ne.s32.totalorder %s46, %s49
      %p58 = scmp.eq.s32.totalorder %s20, 1
      %p59 = por %p57, %p58
      %p60 = scmp.ne.s32.totalorder %s49, %s50
      %p61 = scmp.eq.s32.totalorder %s20, 0
      %p62 = por %p60, %p61
      %p63 = scmp.ne.s32.totalorder %s49, %s50
      %p64 = scmp.eq.s32.totalorder %s21, 1
      %p65 = por %p63, %p64
      %p67 = scmp.ne.s32.totalorder %s50, %s66
      %p68 = scmp.eq.s32.totalorder %s21, 0
      %p69 = por %p67, %p68
      %s70 = ssub.s32 %s15, %s22
      %p71 = scmp.eq.s32.totalorder %s70, 0
      %s73 = sadd.s32 %s72, 1
      %s74 = scalar_select %p71, %s72, %s73
      %p77 = pneg %p71
      %p78 = scmp.eq.s32.totalorder %s15, 1
      %p79 = por %p77, %p78
      %p80 = scmp.ne.s32.totalorder %s72, %s75
      %p81 = scmp.eq.s32.totalorder %s15, 0
      %p82 = por %p80, %p81
      %p83 = scmp.ne.s32.totalorder %s72, %s75
      %p84 = scmp.eq.s32.totalorder %s20, 1
      %p85 = por %p83, %p84
      %p86 = scmp.ne.s32.totalorder %s75, %s76
      %p87 = scmp.eq.s32.totalorder %s20, 0
      %p88 = por %p86, %p87
      %p89 = scmp.ne.s32.totalorder %s75, %s76
      %p90 = scmp.eq.s32.totalorder %s21, 1
      %p91 = por %p89, %p90
      %p93 = scmp.ne.s32.totalorder %s76, %s92
      %p94 = scmp.eq.s32.totalorder %s21, 0
      %p95 = por %p93, %p94
      %p96 = scmp.le.s32.totalorder 1, %s15
      %p97 = scmp.lt.s32.totalorder %s15, 3
      %p98 = pnand %p96, %p97
      %p99 = pneg %p98
      // Predicated region
      $region9: #{tpu_custom_call.1} parent=5 // pred_check
        _
      $region10: #{tpu_custom_call.1} parent=5 // pred_check_branch
        %101 = sbr.rel (%p98) target = $region12
      $region11: #{tpu_custom_call.1} parent=5 // pred_region
        %s102 = ssub.s32 %s15, 1
        // Predicated region
        $region13: #{tpu_custom_call.1} parent=11 // pred_check
          %p103 = pneg %p36
        $region14: #{tpu_custom_call.1} parent=11 // pred_check_branch
          %105 = sbr.rel (%p103) target = $region16
        $region15: #{tpu_custom_call.1} parent=11 // pred_region
          %107 = vsyncadd [#allocation3], 0
          %s109 = sshll.u32 %s0, 4
          %s110 = int_to_ptr.hbm [resolvable:$true] %s109
          %s111 = sshll.u32 [#allocation2], 4
          %s112 = int_to_ptr.vmem [resolvable:$true] %s111
          %114 = dma.hbm_to_vmem [thread:$0]  %s110, 128, %s112, [#allocation3]
        $region16: #{tpu_custom_call.1} parent=11 // pred_fallthru
          _
      $region12: #{tpu_custom_call.1} parent=5 // pred_fallthru
        _
      %p115 = scmp.lt.s32.totalorder %s15, 2
      // Predicated region
      $region17: #{tpu_custom_call.1} parent=5 // pred_check
        %p116 = pneg %p115
      $region18: #{tpu_custom_call.1} parent=5 // pred_check_branch
        %118 = sbr.rel (%p116) target = $region20
      $region19: #{tpu_custom_call.1} parent=5 // pred_region
        // Predicated region
        $region21: #{tpu_custom_call.1} parent=19 // pred_check
          %p119 = pneg %p56
        $region22: #{tpu_custom_call.1} parent=19 // pred_check_branch
          %121 = sbr.rel (%p119) target = $region24
        $region23: #{tpu_custom_call.1} parent=19 // pred_region
          %s122 = sand.u32 %s46, 1
          %s123 = scalar_lea.sflag [#allocation6], %s122
          %s124 = sand.u32 %s46, 1
          %s125 = smul.addr %s124, 128
          %s126 = scalar_lea.vmem [#allocation5], %s125
          %s127 = smul.u32 16, %s15
          %129 = vsyncadd %s123, 0
          %s130 = smul.addr %s127, 8
          %s131 = scalar_lea.hbm %s1, %s130
          %s133 = sshll.u32 %s131, 4
          %s134 = int_to_ptr.hbm [resolvable:$true] %s133
          %s135 = sshll.u32 %s126, 4
          %s136 = int_to_ptr.vmem [resolvable:$true] %s135
          %138 = dma.hbm_to_vmem [thread:$0]  %s134, 2048, %s136, %s123
        $region24: #{tpu_custom_call.1} parent=19 // pred_fallthru
          _
      $region20: #{tpu_custom_call.1} parent=5 // pred_fallthru
        _
      %p139 = scmp.le.s32.totalorder 1, %s15
      %p140 = scmp.lt.s32.totalorder %s15, 3
      %p141 = pnand %p139, %p140
      %p142 = pneg %p141
      // Predicated region
      $region25: #{tpu_custom_call.1} parent=5 // pred_check
        _
      $region26: #{tpu_custom_call.1} parent=5 // pred_check_branch
        %144 = sbr.rel (%p141) target = $region28
      $region27: #{tpu_custom_call.1} parent=5 // pred_region
        %s145 = ssub.s32 %s15, 1
        // Predicated region
        $region29: #{tpu_custom_call.1} parent=27 // pred_check
          %p146 = pneg %p36
        $region30: #{tpu_custom_call.1} parent=27 // pred_check_branch
          %148 = sbr.rel (%p146) target = $region32
        $region31: #{tpu_custom_call.1} parent=27 // pred_region
          %150 = dma.done [#allocation3], 128
        $region32: #{tpu_custom_call.1} parent=27 // pred_fallthru
          _
        %s151 = sand.u32 %s49, 1
        %s152 = scalar_lea.sflag [#allocation6], %s151
        %s153 = sand.u32 %s49, 1
        %s154 = smul.addr %s153, 128
        %s155 = scalar_lea.vmem [#allocation5], %s154
        // Predicated region
        $region33: #{tpu_custom_call.1} parent=27 // pred_check
          %p156 = pneg %p62
        $region34: #{tpu_custom_call.1} parent=27 // pred_check_branch
          %158 = sbr.rel (%p156) target = $region36
        $region35: #{tpu_custom_call.1} parent=27 // pred_region
          %160 = dma.done %s152, 2048
        $region36: #{tpu_custom_call.1} parent=27 // pred_fallthru
          _
        %p161 = pneg %p36
        %p162 = pneg %p33
        %s163 = sand.u32 %s49, 1
        %s164 = scalar_lea.sflag [#allocation6], %s163
        %s165 = sand.u32 %s49, 1
        %s166 = smul.addr %s165, 128
        %s167 = scalar_lea.vmem [#allocation5], %s166
        %p168 = pneg %p62
        %p169 = pneg %p59
        %p170 = pneg %p88
        %p171 = pneg %p85
        %s172 = sand.u32 %s75, 1
        %s173 = scalar_lea.sflag [#allocation4], %s172
        %s174 = sand.u32 %s75, 1
        %s175 = smul.addr %s174, 128
        %s176 = scalar_lea.vmem [#allocation7], %s175
        %s177 = smul.u32 16, %s20
        %s178 = smul.u32 16, %s20
        %v179 = vld [vmem:[%s155] sm:$0xff]
        %v180 = vld [vmem:[%s155 + $0x8] sm:$0xff]
        %v181 = vld [vmem:[%s155 + $0x10] sm:$0xff]
        %v182 = vld [vmem:[%s155 + $0x18] sm:$0xff]
        %v183 = vld [vmem:[%s155 + $0x20] sm:$0xff]
        %v184 = vld [vmem:[%s155 + $0x28] sm:$0xff]
        %v185 = vld [vmem:[%s155 + $0x30] sm:$0xff]
        %v186 = vld [vmem:[%s155 + $0x38] sm:$0xff]
        %v187 = vld [vmem:[%s155 + $0x40] sm:$0xff]
        %v188 = vld [vmem:[%s155 + $0x48] sm:$0xff]
        %v189 = vld [vmem:[%s155 + $0x50] sm:$0xff]
        %v190 = vld [vmem:[%s155 + $0x58] sm:$0xff]
        %v191 = vld [vmem:[%s155 + $0x60] sm:$0xff]
        %v192 = vld [vmem:[%s155 + $0x68] sm:$0xff]
        %v193 = vld [vmem:[%s155 + $0x70] sm:$0xff]
        %v194 = vld [vmem:[%s155 + $0x78] sm:$0xff]
        %v195 = vld [vmem:[#allocation2] sm:$0xff]
        %vm196 = vcmask 64512
        %v198 = vsel %vm196, %v195, 0
        %200 = vmatpush.msra.mxu0 0.0
        %201 = vmatpush.msra.mxu0 0.0
        %202 = vmatpush.msra.mxu0 0.0
        %203 = vmatpush.msra.mxu0 0.0
        %204 = vmatpush.msra.mxu0 0.0
        %205 = vmatpush.msra.mxu0 0.0
        %206 = vmatpush.msra.mxu0 0.0
        %207 = vmatpush.msra.mxu0 0.0
        %208 = vmatpush.msra.mxu0 0.0
        %209 = vmatpush.msra.mxu0 0.0
        %210 = vmatpush.msra.mxu0 0.0
        %211 = vmatpush.msra.mxu0 0.0
        %212 = vmatpush.msra.mxu0 0.0
        %213 = vmatpush.msra.mxu0 0.0
        %214 = vmatpush.msra.mxu0 0.0
        %215 = vmatpush.msra.mxu0 %v179
        %216 = vmatmul.f32.gmra.mxu0 %v198
        %v217 = vpop.f32.mrf.mxu0
        %v218 = vadd.f32 0.0, %v217
        %219 = vdwg.mxu0
        %220 = vmatpush.msra.mxu0 0.0
        %221 = vmatpush.msra.mxu0 0.0
        %222 = vmatpush.msra.mxu0 0.0
        %223 = vmatpush.msra.mxu0 0.0
        %224 = vmatpush.msra.mxu0 0.0
        %225 = vmatpush.msra.mxu0 0.0
        %226 = vmatpush.msra.mxu0 0.0
        %227 = vmatpush.msra.mxu0 0.0
        %228 = vmatpush.msra.mxu0 0.0
        %229 = vmatpush.msra.mxu0 0.0
        %230 = vmatpush.msra.mxu0 0.0
        %231 = vmatpush.msra.mxu0 0.0
        %232 = vmatpush.msra.mxu0 0.0
        %233 = vmatpush.msra.mxu0 0.0
        %234 = vmatpush.msra.mxu0 0.0
        %235 = vmatpush.msra.mxu0 %v180
        %236 = vmatmul.f32.gmra.mxu0 %v198
        %v237 = vpop.f32.mrf.mxu0
        %v238 = vadd.f32 0.0, %v237
        %239 = vdwg.mxu0
        %240 = vmatpush.msra.mxu0 0.0
        %241 = vmatpush.msra.mxu0 0.0
        %242 = vmatpush.msra.mxu0 0.0
        %243 = vmatpush.msra.mxu0 0.0
        %244 = vmatpush.msra.mxu0 0.0
        %245 = vmatpush.msra.mxu0 0.0
        %246 = vmatpush.msra.mxu0 0.0
        %247 = vmatpush.msra.mxu0 0.0
        %248 = vmatpush.msra.mxu0 0.0
        %249 = vmatpush.msra.mxu0 0.0
        %250 = vmatpush.msra.mxu0 0.0
        %251 = vmatpush.msra.mxu0 0.0
        %252 = vmatpush.msra.mxu0 0.0
        %253 = vmatpush.msra.mxu0 0.0
        %254 = vmatpush.msra.mxu0 0.0
        %255 = vmatpush.msra.mxu0 %v181
        %256 = vmatmul.f32.gmra.mxu0 %v198
        %v257 = vpop.f32.mrf.mxu0
        %v258 = vadd.f32 0.0, %v257
        %259 = vdwg.mxu0
        %260 = vmatpush.msra.mxu0 0.0
        %261 = vmatpush.msra.mxu0 0.0
        %262 = vmatpush.msra.mxu0 0.0
        %263 = vmatpush.msra.mxu0 0.0
        %264 = vmatpush.msra.mxu0 0.0
        %265 = vmatpush.msra.mxu0 0.0
        %266 = vmatpush.msra.mxu0 0.0
        %267 = vmatpush.msra.mxu0 0.0
        %268 = vmatpush.msra.mxu0 0.0
        %269 = vmatpush.msra.mxu0 0.0
        %270 = vmatpush.msra.mxu0 0.0
        %271 = vmatpush.msra.mxu0 0.0
        %272 = vmatpush.msra.mxu0 0.0
        %273 = vmatpush.msra.mxu0 0.0
        %274 = vmatpush.msra.mxu0 0.0
        %275 = vmatpush.msra.mxu0 %v182
        %276 = vmatmul.f32.gmra.mxu0 %v198
        %v277 = vpop.f32.mrf.mxu0
        %v278 = vadd.f32 0.0, %v277
        %279 = vdwg.mxu0
        %280 = vmatpush.msra.mxu0 0.0
        %281 = vmatpush.msra.mxu0 0.0
        %282 = vmatpush.msra.mxu0 0.0
        %283 = vmatpush.msra.mxu0 0.0
        %284 = vmatpush.msra.mxu0 0.0
        %285 = vmatpush.msra.mxu0 0.0
        %286 = vmatpush.msra.mxu0 0.0
        %287 = vmatpush.msra.mxu0 0.0
        %288 = vmatpush.msra.mxu0 0.0
        %289 = vmatpush.msra.mxu0 0.0
        %290 = vmatpush.msra.mxu0 0.0
        %291 = vmatpush.msra.mxu0 0.0
        %292 = vmatpush.msra.mxu0 0.0
        %293 = vmatpush.msra.mxu0 0.0
        %294 = vmatpush.msra.mxu0 0.0
        %295 = vmatpush.msra.mxu0 %v183
        %296 = vmatmul.f32.gmra.mxu0 %v198
        %v297 = vpop.f32.mrf.mxu0
        %v298 = vadd.f32 0.0, %v297
        %299 = vdwg.mxu0
        %300 = vmatpush.msra.mxu0 0.0
        %301 = vmatpush.msra.mxu0 0.0
        %302 = vmatpush.msra.mxu0 0.0
        %303 = vmatpush.msra.mxu0 0.0
        %304 = vmatpush.msra.mxu0 0.0
        %305 = vmatpush.msra.mxu0 0.0
        %306 = vmatpush.msra.mxu0 0.0
        %307 = vmatpush.msra.mxu0 0.0
        %308 = vmatpush.msra.mxu0 0.0
        %309 = vmatpush.msra.mxu0 0.0
        %310 = vmatpush.msra.mxu0 0.0
        %311 = vmatpush.msra.mxu0 0.0
        %312 = vmatpush.msra.mxu0 0.0
        %313 = vmatpush.msra.mxu0 0.0
        %314 = vmatpush.msra.mxu0 0.0
        %315 = vmatpush.msra.mxu0 %v184
        %316 = vmatmul.f32.gmra.mxu0 %v198
        %v317 = vpop.f32.mrf.mxu0
        %v318 = vadd.f32 0.0, %v317
        %319 = vdwg.mxu0
        %320 = vmatpush.msra.mxu0 0.0
        %321 = vmatpush.msra.mxu0 0.0
        %322 = vmatpush.msra.mxu0 0.0
        %323 = vmatpush.msra.mxu0 0.0
        %324 = vmatpush.msra.mxu0 0.0
        %325 = vmatpush.msra.mxu0 0.0
        %326 = vmatpush.msra.mxu0 0.0
        %327 = vmatpush.msra.mxu0 0.0
        %328 = vmatpush.msra.mxu0 0.0
        %329 = vmatpush.msra.mxu0 0.0
        %330 = vmatpush.msra.mxu0 0.0
        %331 = vmatpush.msra.mxu0 0.0
        %332 = vmatpush.msra.mxu0 0.0
        %333 = vmatpush.msra.mxu0 0.0
        %334 = vmatpush.msra.mxu0 0.0
        %335 = vmatpush.msra.mxu0 %v185
        %336 = vmatmul.f32.gmra.mxu0 %v198
        %v337 = vpop.f32.mrf.mxu0
        %v338 = vadd.f32 0.0, %v337
        %339 = vdwg.mxu0
        %340 = vmatpush.msra.mxu0 0.0
        %341 = vmatpush.msra.mxu0 0.0
        %342 = vmatpush.msra.mxu0 0.0
        %343 = vmatpush.msra.mxu0 0.0
        %344 = vmatpush.msra.mxu0 0.0
        %345 = vmatpush.msra.mxu0 0.0
        %346 = vmatpush.msra.mxu0 0.0
        %347 = vmatpush.msra.mxu0 0.0
        %348 = vmatpush.msra.mxu0 0.0
        %349 = vmatpush.msra.mxu0 0.0
        %350 = vmatpush.msra.mxu0 0.0
        %351 = vmatpush.msra.mxu0 0.0
        %352 = vmatpush.msra.mxu0 0.0
        %353 = vmatpush.msra.mxu0 0.0
        %354 = vmatpush.msra.mxu0 0.0
        %355 = vmatpush.msra.mxu0 %v186
        %356 = vmatmul.f32.gmra.mxu0 %v198
        %v357 = vpop.f32.mrf.mxu0
        %v358 = vadd.f32 0.0, %v357
        %359 = vdwg.mxu0
        %360 = vmatpush.msra.mxu0 0.0
        %361 = vmatpush.msra.mxu0 0.0
        %362 = vmatpush.msra.mxu0 0.0
        %363 = vmatpush.msra.mxu0 0.0
        %364 = vmatpush.msra.mxu0 0.0
        %365 = vmatpush.msra.mxu0 0.0
        %366 = vmatpush.msra.mxu0 0.0
        %367 = vmatpush.msra.mxu0 0.0
        %368 = vmatpush.msra.mxu0 0.0
        %369 = vmatpush.msra.mxu0 0.0
        %370 = vmatpush.msra.mxu0 0.0
        %371 = vmatpush.msra.mxu0 0.0
        %372 = vmatpush.msra.mxu0 0.0
        %373 = vmatpush.msra.mxu0 0.0
        %374 = vmatpush.msra.mxu0 0.0
        %375 = vmatpush.msra.mxu0 %v187
        %376 = vmatmul.f32.gmra.mxu0 %v198
        %v377 = vpop.f32.mrf.mxu0
        %v378 = vadd.f32 0.0, %v377
        %379 = vdwg.mxu0
        %380 = vmatpush.msra.mxu0 0.0
        %381 = vmatpush.msra.mxu0 0.0
        %382 = vmatpush.msra.mxu0 0.0
        %383 = vmatpush.msra.mxu0 0.0
        %384 = vmatpush.msra.mxu0 0.0
        %385 = vmatpush.msra.mxu0 0.0
        %386 = vmatpush.msra.mxu0 0.0
        %387 = vmatpush.msra.mxu0 0.0
        %388 = vmatpush.msra.mxu0 0.0
        %389 = vmatpush.msra.mxu0 0.0
        %390 = vmatpush.msra.mxu0 0.0
        %391 = vmatpush.msra.mxu0 0.0
        %392 = vmatpush.msra.mxu0 0.0
        %393 = vmatpush.msra.mxu0 0.0
        %394 = vmatpush.msra.mxu0 0.0
        %395 = vmatpush.msra.mxu0 %v188
        %396 = vmatmul.f32.gmra.mxu0 %v198
        %v397 = vpop.f32.mrf.mxu0
        %v398 = vadd.f32 0.0, %v397
        %399 = vdwg.mxu0
        %400 = vmatpush.msra.mxu0 0.0
        %401 = vmatpush.msra.mxu0 0.0
        %402 = vmatpush.msra.mxu0 0.0
        %403 = vmatpush.msra.mxu0 0.0
        %404 = vmatpush.msra.mxu0 0.0
        %405 = vmatpush.msra.mxu0 0.0
        %406 = vmatpush.msra.mxu0 0.0
        %407 = vmatpush.msra.mxu0 0.0
        %408 = vmatpush.msra.mxu0 0.0
        %409 = vmatpush.msra.mxu0 0.0
        %410 = vmatpush.msra.mxu0 0.0
        %411 = vmatpush.msra.mxu0 0.0
        %412 = vmatpush.msra.mxu0 0.0
        %413 = vmatpush.msra.mxu0 0.0
        %414 = vmatpush.msra.mxu0 0.0
        %415 = vmatpush.msra.mxu0 %v189
        %416 = vmatmul.f32.gmra.mxu0 %v198
        %v417 = vpop.f32.mrf.mxu0
        %v418 = vadd.f32 0.0, %v417
        %419 = vdwg.mxu0
        %420 = vmatpush.msra.mxu0 0.0
        %421 = vmatpush.msra.mxu0 0.0
        %422 = vmatpush.msra.mxu0 0.0
        %423 = vmatpush.msra.mxu0 0.0
        %424 = vmatpush.msra.mxu0 0.0
        %425 = vmatpush.msra.mxu0 0.0
        %426 = vmatpush.msra.mxu0 0.0
        %427 = vmatpush.msra.mxu0 0.0
        %428 = vmatpush.msra.mxu0 0.0
        %429 = vmatpush.msra.mxu0 0.0
        %430 = vmatpush.msra.mxu0 0.0
        %431 = vmatpush.msra.mxu0 0.0
        %432 = vmatpush.msra.mxu0 0.0
        %433 = vmatpush.msra.mxu0 0.0
        %434 = vmatpush.msra.mxu0 0.0
        %435 = vmatpush.msra.mxu0 %v190
        %436 = vmatmul.f32.gmra.mxu0 %v198
        %v437 = vpop.f32.mrf.mxu0
        %v438 = vadd.f32 0.0, %v437
        %439 = vdwg.mxu0
        %440 = vmatpush.msra.mxu0 0.0
        %441 = vmatpush.msra.mxu0 0.0
        %442 = vmatpush.msra.mxu0 0.0
        %443 = vmatpush.msra.mxu0 0.0
        %444 = vmatpush.msra.mxu0 0.0
        %445 = vmatpush.msra.mxu0 0.0
        %446 = vmatpush.msra.mxu0 0.0
        %447 = vmatpush.msra.mxu0 0.0
        %448 = vmatpush.msra.mxu0 0.0
        %449 = vmatpush.msra.mxu0 0.0
        %450 = vmatpush.msra.mxu0 0.0
        %451 = vmatpush.msra.mxu0 0.0
        %452 = vmatpush.msra.mxu0 0.0
        %453 = vmatpush.msra.mxu0 0.0
        %454 = vmatpush.msra.mxu0 0.0
        %455 = vmatpush.msra.mxu0 %v191
        %456 = vmatmul.f32.gmra.mxu0 %v198
        %v457 = vpop.f32.mrf.mxu0
        %v458 = vadd.f32 0.0, %v457
        %459 = vdwg.mxu0
        %460 = vmatpush.msra.mxu0 0.0
        %461 = vmatpush.msra.mxu0 0.0
        %462 = vmatpush.msra.mxu0 0.0
        %463 = vmatpush.msra.mxu0 0.0
        %464 = vmatpush.msra.mxu0 0.0
        %465 = vmatpush.msra.mxu0 0.0
        %466 = vmatpush.msra.mxu0 0.0
        %467 = vmatpush.msra.mxu0 0.0
        %468 = vmatpush.msra.mxu0 0.0
        %469 = vmatpush.msra.mxu0 0.0
        %470 = vmatpush.msra.mxu0 0.0
        %471 = vmatpush.msra.mxu0 0.0
        %472 = vmatpush.msra.mxu0 0.0
        %473 = vmatpush.msra.mxu0 0.0
        %474 = vmatpush.msra.mxu0 0.0
        %475 = vmatpush.msra.mxu0 %v192
        %476 = vmatmul.f32.gmra.mxu0 %v198
        %v477 = vpop.f32.mrf.mxu0
        %v478 = vadd.f32 0.0, %v477
        %479 = vdwg.mxu0
        %480 = vmatpush.msra.mxu0 0.0
        %481 = vmatpush.msra.mxu0 0.0
        %482 = vmatpush.msra.mxu0 0.0
        %483 = vmatpush.msra.mxu0 0.0
        %484 = vmatpush.msra.mxu0 0.0
        %485 = vmatpush.msra.mxu0 0.0
        %486 = vmatpush.msra.mxu0 0.0
        %487 = vmatpush.msra.mxu0 0.0
        %488 = vmatpush.msra.mxu0 0.0
        %489 = vmatpush.msra.mxu0 0.0
        %490 = vmatpush.msra.mxu0 0.0
        %491 = vmatpush.msra.mxu0 0.0
        %492 = vmatpush.msra.mxu0 0.0
        %493 = vmatpush.msra.mxu0 0.0
        %494 = vmatpush.msra.mxu0 0.0
        %495 = vmatpush.msra.mxu0 %v193
        %496 = vmatmul.f32.gmra.mxu0 %v198
        %v497 = vpop.f32.mrf.mxu0
        %v498 = vadd.f32 0.0, %v497
        %499 = vdwg.mxu0
        %500 = vmatpush.msra.mxu0 0.0
        %501 = vmatpush.msra.mxu0 0.0
        %502 = vmatpush.msra.mxu0 0.0
        %503 = vmatpush.msra.mxu0 0.0
        %504 = vmatpush.msra.mxu0 0.0
        %505 = vmatpush.msra.mxu0 0.0
        %506 = vmatpush.msra.mxu0 0.0
        %507 = vmatpush.msra.mxu0 0.0
        %508 = vmatpush.msra.mxu0 0.0
        %509 = vmatpush.msra.mxu0 0.0
        %510 = vmatpush.msra.mxu0 0.0
        %511 = vmatpush.msra.mxu0 0.0
        %512 = vmatpush.msra.mxu0 0.0
        %513 = vmatpush.msra.mxu0 0.0
        %514 = vmatpush.msra.mxu0 0.0
        %515 = vmatpush.msra.mxu0 %v194
        %516 = vmatmul.f32.gmra.mxu0 %v198
        %v517 = vpop.f32.mrf.mxu0
        %v518 = vadd.f32 0.0, %v517
        %519 = vdwg.mxu0
        %v520 = vmul.f32 %v179, 0.9
        %v521 = vmul.f32 %v180, 0.9
        %v522 = vmul.f32 %v181, 0.9
        %v523 = vmul.f32 %v182, 0.9
        %v524 = vmul.f32 %v183, 0.9
        %v525 = vmul.f32 %v184, 0.9
        %v526 = vmul.f32 %v185, 0.9
        %v527 = vmul.f32 %v186, 0.9
        %v528 = vmul.f32 %v187, 0.9
        %v529 = vmul.f32 %v188, 0.9
        %v530 = vmul.f32 %v189, 0.9
        %v531 = vmul.f32 %v190, 0.9
        %v532 = vmul.f32 %v191, 0.9
        %v533 = vmul.f32 %v192, 0.9
        %v534 = vmul.f32 %v193, 0.9
        %v535 = vmul.f32 %v194, 0.9
        %v536 = vmul.f32 %v218, 0.1
        %v537 = vmul.f32 %v238, 0.1
        %v538 = vmul.f32 %v258, 0.1
        %v539 = vmul.f32 %v278, 0.1
        %v540 = vmul.f32 %v298, 0.1
        %v541 = vmul.f32 %v318, 0.1
        %v542 = vmul.f32 %v338, 0.1
        %v543 = vmul.f32 %v358, 0.1
        %v544 = vmul.f32 %v378, 0.1
        %v545 = vmul.f32 %v398, 0.1
        %v546 = vmul.f32 %v418, 0.1
        %v547 = vmul.f32 %v438, 0.1
        %v548 = vmul.f32 %v458, 0.1
        %v549 = vmul.f32 %v478, 0.1
        %v550 = vmul.f32 %v498, 0.1
        %v551 = vmul.f32 %v518, 0.1
        %v552 = vadd.f32 %v520, %v536
        %v553 = vadd.f32 %v521, %v537
        %v554 = vadd.f32 %v522, %v538
        %v555 = vadd.f32 %v523, %v539
        %v556 = vadd.f32 %v524, %v540
        %v557 = vadd.f32 %v525, %v541
        %v558 = vadd.f32 %v526, %v542
        %v559 = vadd.f32 %v527, %v543
        %v560 = vadd.f32 %v528, %v544
        %v561 = vadd.f32 %v529, %v545
        %v562 = vadd.f32 %v530, %v546
        %v563 = vadd.f32 %v531, %v547
        %v564 = vadd.f32 %v532, %v548
        %v565 = vadd.f32 %v533, %v549
        %v566 = vadd.f32 %v534, %v550
        %v567 = vadd.f32 %v535, %v551
        %568 = vst [vmem:[%s176] sm:$0xff] %v552
        %569 = vst [vmem:[%s176 + $0x8] sm:$0xff] %v553
        %570 = vst [vmem:[%s176 + $0x10] sm:$0xff] %v554
        %571 = vst [vmem:[%s176 + $0x18] sm:$0xff] %v555
        %572 = vst [vmem:[%s176 + $0x20] sm:$0xff] %v556
        %573 = vst [vmem:[%s176 + $0x28] sm:$0xff] %v557
        %574 = vst [vmem:[%s176 + $0x30] sm:$0xff] %v558
        %575 = vst [vmem:[%s176 + $0x38] sm:$0xff] %v559
        %576 = vst [vmem:[%s176 + $0x40] sm:$0xff] %v560
        %577 = vst [vmem:[%s176 + $0x48] sm:$0xff] %v561
        %578 = vst [vmem:[%s176 + $0x50] sm:$0xff] %v562
        %579 = vst [vmem:[%s176 + $0x58] sm:$0xff] %v563
        %580 = vst [vmem:[%s176 + $0x60] sm:$0xff] %v564
        %581 = vst [vmem:[%s176 + $0x68] sm:$0xff] %v565
        %582 = vst [vmem:[%s176 + $0x70] sm:$0xff] %v566
        %583 = vst [vmem:[%s176 + $0x78] sm:$0xff] %v567
        %s584 = sand.u32 %s75, 1
        %s585 = scalar_lea.sflag [#allocation4], %s584
        %s586 = sand.u32 %s75, 1
        %s587 = smul.addr %s586, 128
        %s588 = scalar_lea.vmem [#allocation7], %s587
        // Predicated region
        $region37: #{tpu_custom_call.1} parent=27 // pred_check
          %p589 = pneg %p85
        $region38: #{tpu_custom_call.1} parent=27 // pred_check_branch
          %591 = sbr.rel (%p589) target = $region40
        $region39: #{tpu_custom_call.1} parent=27 // pred_region
          %s592 = smul.u32 16, %s20
          %594 = vsyncadd %s585, 0
          %s595 = smul.addr %s592, 8
          %s596 = scalar_lea.hbm %s2, %s595
          %s598 = sshll.u32 %s588, 4
          %s599 = int_to_ptr.vmem [resolvable:$true] %s598
          %s600 = sshll.u32 %s596, 4
          %s601 = int_to_ptr.hbm [resolvable:$true] %s600
          %603 = dma.vmem_to_hbm [thread:$0]  %s599, 2048, %s601, %s585
        $region40: #{tpu_custom_call.1} parent=27 // pred_fallthru
          _
      $region28: #{tpu_custom_call.1} parent=5 // pred_fallthru
        _
      %p604 = scmp.le.s32.totalorder 2, %s15
      // Predicated region
      $region41: #{tpu_custom_call.1} parent=5 // pred_check
        %p605 = pneg %p604
      $region42: #{tpu_custom_call.1} parent=5 // pred_check_branch
        %607 = sbr.rel (%p605) target = $region44
      $region43: #{tpu_custom_call.1} parent=5 // pred_region
        %s608 = ssub.s32 %s15, 2
        // Predicated region
        $region45: #{tpu_custom_call.1} parent=43 // pred_check
          %p609 = pneg %p91
        $region46: #{tpu_custom_call.1} parent=43 // pred_check_branch
          %611 = sbr.rel (%p609) target = $region48
        $region47: #{tpu_custom_call.1} parent=43 // pred_region
          %s612 = sand.u32 %s76, 1
          %s613 = scalar_lea.sflag [#allocation4], %s612
          %s614 = sand.u32 %s76, 1
          %s615 = smul.addr %s614, 128
          %s616 = scalar_lea.vmem [#allocation7], %s615
          %618 = dma.done %s613, 2048
        $region48: #{tpu_custom_call.1} parent=43 // pred_fallthru
          _
      $region44: #{tpu_custom_call.1} parent=5 // pred_fallthru
        _
    $region6: #{tpu_custom_call.1} parent=1 // loop_footer
      %s19 = sadd.s32 1, %s15
    $region7: #{tpu_custom_call.1} parent=1 // loop_footer_branch
      %14 = sbr.rel target = $region3
    $region8: #{tpu_custom_call.1} parent=1 // loop_exit
      _
    %619 = vsyncpa [#allocation3], 1
    %s620 = scalar_lea.sflag [#allocation3], 1
    %621 = vsyncpa %s620, 1
    %622 = vsyncpa [#allocation6], 1
    %s623 = scalar_lea.sflag [#allocation6], 1
    %624 = vsyncpa %s623, 1
    %625 = vsyncpa [#allocation4], 1
    %s626 = scalar_lea.sflag [#allocation4], 1
    %627 = vsyncpa %s626, 1

</llo_original>
